<compile_context>
chip_gen: v7x
topology: tpu7x:2x2x1
jax: 0.10.0
libtpu: 0.0.40
codegen_flags: <defaults>
</compile_context>

<pallas_src>
import functools

import jax
import jax.numpy as jnp
from jax.experimental import pallas as pl
from jax.experimental.pallas import tpu as pltpu


def _round_up(x, m):
    return ((x + m - 1) // m) * m


def criterion_kernel(pred_points_ref, gt_points_ref, logits_ref, labels_ref,
                     weight_ref, out_ref, acc_ref):
    """Grid axis 0 tiles the flattened proposal axis (N*L)."""
    step = pl.program_id(0)

    @pl.when(step == 0)
    def _():
        acc_ref[0] = jnp.float32(0.0)   # sum((pred - gt)^2)
        acc_ref[1] = jnp.float32(0.0)   # sum(w[label] * nll)
        acc_ref[2] = jnp.float32(0.0)   # sum(w[label])

    # ---- point loss: sum of squared errors on lane-dense (1, 2*T) tiles ----
    diff = (pred_points_ref[...].astype(jnp.float32)
            - gt_points_ref[...].astype(jnp.float32))
    point_partial = jnp.sum(diff * diff)

    # ---- weighted cross-entropy partial sums -------------------------------
    logits = logits_ref[...].astype(jnp.float32)    # (C, T), proposals on lanes
    labels = labels_ref[...]                        # (1, T)  int32
    C = logits.shape[0]

    # numerically stable log-sum-exp over the C planes (VPU elementwise only)
    m = logits[0:1, :]
    for c in range(1, C):
        m = jnp.maximum(m, logits[c:c + 1, :])
    s = jnp.exp(logits[0:1, :] - m)
    for c in range(1, C):
        s = s + jnp.exp(logits[c:c + 1, :] - m)
    lse = jnp.log(s) + m                            # (1, T)

    # target logit and per-target class weight via compare+select per class.
    # Labels outside [0, C) (padding / ignore) keep weight 0 -> contribute 0.
    picked = jnp.zeros_like(m)
    wt = jnp.zeros_like(m)
    for c in range(C):
        is_c = labels == c
        picked = jnp.where(is_c, logits[c:c + 1, :], picked)
        wt = jnp.where(is_c, weight_ref[c], wt)

    nll = lse - picked                              # (1, T)

    acc_ref[0] += point_partial
    acc_ref[1] += jnp.sum(wt * nll)
    acc_ref[2] += jnp.sum(wt)

    @pl.when(step == pl.num_programs(0) - 1)
    def _():
        # SSE point loss + weighted-mean cross-entropy (PyTorch semantics)
        out_ref[0, 0] = acc_ref[0] + acc_ref[1] / acc_ref[2]


@functools.partial(jax.jit, static_argnames=("tile",))
def criterion_forward(pred_points, pred_logits, gt_points, gt_labels,
                      empty_weight, *, tile=512):
    """pred_points/gt_points: (N, L, 2); pred_logits: (N, L, C);
    gt_labels: (N, 1, H, W) with L = H*W; empty_weight: (C,)."""
    N, L, C = pred_logits.shape
    NL = N * L

    # lane-dense layout plumbing (free row-major reshapes; the class axis
    # transpose is tiny since C = num_classes + 1 is small).
    labels = gt_labels.reshape(1, NL).astype(jnp.int32)            # (1, NL)
    pts = pred_points.reshape(1, 2 * NL)                           # (1, 2*NL)
    gpts = gt_points.reshape(1, 2 * NL)
    logits = jnp.transpose(pred_logits, (2, 0, 1)).reshape(C, NL)  # (C, NL)
    w = empty_weight.reshape(C).astype(jnp.float32)                # (C,) -> SMEM

    # tile the flattened proposal axis; pad with out-of-range labels so the
    # padded positions get zero weight and contribute nothing.
    t = min(tile, _round_up(NL, 128))
    pnl = _round_up(NL, t)
    pad = pnl - NL
    if pad:
        labels = jnp.pad(labels, ((0, 0), (0, pad)), constant_values=C)
        logits = jnp.pad(logits, ((0, 0), (0, pad)))
        pts = jnp.pad(pts, ((0, 0), (0, 2 * pad)))
        gpts = jnp.pad(gpts, ((0, 0), (0, 2 * pad)))
    grid = (pnl // t,)

    out = pl.pallas_call(
        criterion_kernel,
        out_shape=jax.ShapeDtypeStruct((1, 1), jnp.float32),
        grid=grid,
        in_specs=[
            pl.BlockSpec((1, 2 * t), lambda i: (0, i)),   # pred_points
            pl.BlockSpec((1, 2 * t), lambda i: (0, i)),   # gt_points
            pl.BlockSpec((C, t), lambda i: (0, i)),       # logits (C, NL)
            pl.BlockSpec((1, t), lambda i: (0, i)),       # labels
            pl.BlockSpec(memory_space=pltpu.SMEM),        # class weights
        ],
        out_specs=pl.BlockSpec(memory_space=pltpu.SMEM),
        scratch_shapes=[pltpu.SMEM((3,), jnp.float32)],
        compiler_params=pltpu.CompilerParams(
            dimension_semantics=("arbitrary",)),
    )(pts, gpts, logits, labels, w)
    return out[0, 0]


def criterion_ref(pred_points, pred_logits, gt_points, gt_labels, empty_weight):
    """Pure-JAX reference mirroring the PyTorch semantics (for verification)."""
    N = gt_labels.shape[0]
    labels = gt_labels.reshape(N, -1).astype(jnp.int32)
    point = jnp.sum((pred_points - gt_points) ** 2)
    logp = jax.nn.log_softmax(pred_logits, axis=-1)
    picked = jnp.take_along_axis(logp, labels[..., None], axis=-1)[..., 0]
    wt = empty_weight[labels]
    cls = jnp.sum(wt * (-picked)) / jnp.sum(wt)
    return point + cls


if __name__ == "__main__":
    key = jax.random.PRNGKey(0)
    N, H, W = 2, 8, 8           # batch, label-map spatial dims
    num_classes = 1
    C = num_classes + 1         # p2pnet: background (class 0) + point class
    L = H * W                   # number of proposals
    eos_coef = 0.5

    k1, k2, k3, k4 = jax.random.split(key, 4)
    pred_points = jax.random.normal(k1, (N, L, 2), jnp.float32)
    gt_points   = jax.random.normal(k2, (N, L, 2), jnp.float32)
    pred_logits = jax.random.normal(k3, (N, L, C), jnp.float32)
    gt_labels   = jax.random.randint(k4, (N, 1, H, W), 0, C, jnp.int32)

    # deterministic parameter init, matching Criterion.__init__
    empty_weight = jnp.ones((C,), jnp.float32).at[0].set(eos_coef)

    loss = criterion_forward(pred_points, pred_logits, gt_points, gt_labels,
                             empty_weight)
    jax.block_until_ready(loss)

    ref = criterion_ref(pred_points, pred_logits, gt_points, gt_labels,
                        empty_weight)
    assert jnp.allclose(loss, ref, rtol=1e-5, atol=1e-5), (loss, ref)

    print("KERNEL_OK")
</pallas_src>

<mosaic_0001>
module attributes {stable_mosaic.version = 11 : i64} {
  func.func @criterion_kernel(%arg0: i32, %arg1: memref<1x256xf32, #tpu.memory_space<vmem>>, %arg2: memref<1x256xf32, #tpu.memory_space<vmem>>, %arg3: memref<2x128xf32, #tpu.memory_space<vmem>>, %arg4: memref<1x128xi32, #tpu.memory_space<vmem>>, %arg5: memref<2xf32, #tpu.memory_space<smem>>, %arg6: memref<1x1xf32, #tpu.memory_space<smem>>, %arg7: memref<3xf32, #tpu.memory_space<smem>>) attributes {dimension_semantics = [#tpu.dimension_semantics<arbitrary>], iteration_bounds = array<i64: 1>, scalar_prefetch = 0 : i64, scratch_operands = 1 : i64, tpu.core_type = #tpu.core_type<tc>, window_params = [{transform_indices = @transform_0, window_bounds = array<i64: 1, 256>}, {transform_indices = @transform_1, window_bounds = array<i64: 1, 256>}, {transform_indices = @transform_2, window_bounds = array<i64: 2, 128>}, {transform_indices = @transform_3, window_bounds = array<i64: 1, 128>}, {transform_indices = @transform_4, window_bounds = array<i64: 2>}, {transform_indices = @transform_5, window_bounds = array<i64: 1, 1>}]} {
    %c0_i32 = arith.constant 0 : i32
    %0 = arith.cmpi eq, %arg0, %c0_i32 : i32
    %1 = arith.extui %0 : i1 to i32
    %c0_i32_0 = arith.constant 0 : i32
    %2 = arith.cmpi ne, %1, %c0_i32_0 : i32
    scf.if %2 {
      %cst_21 = arith.constant 0.000000e+00 : f32
      %c0_22 = arith.constant 0 : index
      %63 = memref.load %arg7[%c0_22] : memref<3xf32, #tpu.memory_space<smem>>
      memref.store %cst_21, %arg7[%c0_22] : memref<3xf32, #tpu.memory_space<smem>>
      %cst_23 = arith.constant 0.000000e+00 : f32
      %c1_24 = arith.constant 1 : index
      %64 = memref.load %arg7[%c1_24] : memref<3xf32, #tpu.memory_space<smem>>
      memref.store %cst_23, %arg7[%c1_24] : memref<3xf32, #tpu.memory_space<smem>>
      %cst_25 = arith.constant 0.000000e+00 : f32
      %c2_26 = arith.constant 2 : index
      %65 = memref.load %arg7[%c2_26] : memref<3xf32, #tpu.memory_space<smem>>
      memref.store %cst_25, %arg7[%c2_26] : memref<3xf32, #tpu.memory_space<smem>>
    } else {
    }
    %c0 = arith.constant 0 : index
    %c0_1 = arith.constant 0 : index
    %3 = vector.load %arg1[%c0, %c0_1] : memref<1x256xf32, #tpu.memory_space<vmem>>, vector<1x256xf32>
    %c0_2 = arith.constant 0 : index
    %c0_3 = arith.constant 0 : index
    %4 = vector.load %arg2[%c0_2, %c0_3] : memref<1x256xf32, #tpu.memory_space<vmem>>, vector<1x256xf32>
    %5 = arith.subf %3, %4 : vector<1x256xf32>
    %6 = arith.mulf %5, %5 : vector<1x256xf32>
    %7 = vector.shape_cast %6 : vector<1x256xf32> to vector<1x1x256xf32>
    %cst = arith.constant dense<0.000000e+00> : vector<1xf32>
    %8 = vector.multi_reduction <add>, %7, %cst [1, 2] : vector<1x1x256xf32> to vector<1xf32>
    %9 = vector.shape_cast %8 : vector<1xf32> to vector<1x1x1xf32>
    %10 = vector.extract %9[0, 0, 0] : f32 from vector<1x1x1xf32>
    %c0_4 = arith.constant 0 : index
    %c0_5 = arith.constant 0 : index
    %11 = vector.load %arg3[%c0_4, %c0_5] : memref<2x128xf32, #tpu.memory_space<vmem>>, vector<2x128xf32>
    %c0_6 = arith.constant 0 : index
    %c0_7 = arith.constant 0 : index
    %12 = vector.load %arg4[%c0_6, %c0_7] : memref<1x128xi32, #tpu.memory_space<vmem>>, vector<1x128xi32>
    %13 = vector.extract_strided_slice %11 {offsets = [0, 0], sizes = [1, 128], strides = [1, 1]} : vector<2x128xf32> to vector<1x128xf32>
    %14 = vector.extract_strided_slice %11 {offsets = [1, 0], sizes = [1, 128], strides = [1, 1]} : vector<2x128xf32> to vector<1x128xf32>
    %15 = arith.maximumf %13, %14 : vector<1x128xf32>
    %16 = vector.extract_strided_slice %11 {offsets = [0, 0], sizes = [1, 128], strides = [1, 1]} : vector<2x128xf32> to vector<1x128xf32>
    %17 = arith.subf %16, %15 : vector<1x128xf32>
    %18 = math.exp %17 : vector<1x128xf32>
    %19 = vector.extract_strided_slice %11 {offsets = [1, 0], sizes = [1, 128], strides = [1, 1]} : vector<2x128xf32> to vector<1x128xf32>
    %20 = arith.subf %19, %15 : vector<1x128xf32>
    %21 = math.exp %20 : vector<1x128xf32>
    %22 = arith.addf %18, %21 : vector<1x128xf32>
    %23 = math.log %22 : vector<1x128xf32>
    %24 = arith.addf %23, %15 : vector<1x128xf32>
    %cst_8 = arith.constant 0.000000e+00 : f32
    %25 = vector.broadcast %cst_8 : f32 to vector<1x128xf32>
    %cst_9 = arith.constant 0.000000e+00 : f32
    %26 = vector.broadcast %cst_9 : f32 to vector<1x128xf32>
    %c0_i32_10 = arith.constant 0 : i32
    %27 = vector.broadcast %c0_i32_10 : i32 to vector<1x128xi32>
    %28 = arith.cmpi eq, %12, %27 : vector<1x128xi32>
    %29 = vector.extract_strided_slice %11 {offsets = [0, 0], sizes = [1, 128], strides = [1, 1]} : vector<2x128xf32> to vector<1x128xf32>
    %30 = arith.select %28, %29, %25 : vector<1x128xi1>, vector<1x128xf32>
    %c0_11 = arith.constant 0 : index
    %31 = memref.load %arg5[%c0_11] : memref<2xf32, #tpu.memory_space<smem>>
    %32 = vector.broadcast %31 : f32 to vector<1x128xf32>
    %33 = arith.select %28, %32, %26 : vector<1x128xi1>, vector<1x128xf32>
    %c1_i32 = arith.constant 1 : i32
    %34 = vector.broadcast %c1_i32 : i32 to vector<1x128xi32>
    %35 = arith.cmpi eq, %12, %34 : vector<1x128xi32>
    %36 = vector.extract_strided_slice %11 {offsets = [1, 0], sizes = [1, 128], strides = [1, 1]} : vector<2x128xf32> to vector<1x128xf32>
    %37 = arith.select %35, %36, %30 : vector<1x128xi1>, vector<1x128xf32>
    %c1 = arith.constant 1 : index
    %38 = memref.load %arg5[%c1] : memref<2xf32, #tpu.memory_space<smem>>
    %39 = vector.broadcast %38 : f32 to vector<1x128xf32>
    %40 = arith.select %35, %39, %33 : vector<1x128xi1>, vector<1x128xf32>
    %41 = arith.subf %24, %37 : vector<1x128xf32>
    %c0_12 = arith.constant 0 : index
    %42 = memref.load %arg7[%c0_12] : memref<3xf32, #tpu.memory_space<smem>>
    %43 = arith.addf %42, %10 : f32
    %c0_13 = arith.constant 0 : index
    %44 = memref.load %arg7[%c0_13] : memref<3xf32, #tpu.memory_space<smem>>
    memref.store %43, %arg7[%c0_13] : memref<3xf32, #tpu.memory_space<smem>>
    %c1_14 = arith.constant 1 : index
    %45 = memref.load %arg7[%c1_14] : memref<3xf32, #tpu.memory_space<smem>>
    %46 = arith.mulf %40, %41 : vector<1x128xf32>
    %47 = vector.shape_cast %46 : vector<1x128xf32> to vector<1x1x128xf32>
    %cst_15 = arith.constant dense<0.000000e+00> : vector<1xf32>
    %48 = vector.multi_reduction <add>, %47, %cst_15 [1, 2] : vector<1x1x128xf32> to vector<1xf32>
    %49 = vector.shape_cast %48 : vector<1xf32> to vector<1x1x1xf32>
    %50 = vector.extract %49[0, 0, 0] : f32 from vector<1x1x1xf32>
    %51 = arith.addf %45, %50 : f32
    %c1_16 = arith.constant 1 : index
    %52 = memref.load %arg7[%c1_16] : memref<3xf32, #tpu.memory_space<smem>>
    memref.store %51, %arg7[%c1_16] : memref<3xf32, #tpu.memory_space<smem>>
    %c2 = arith.constant 2 : index
    %53 = memref.load %arg7[%c2] : memref<3xf32, #tpu.memory_space<smem>>
    %54 = vector.shape_cast %40 : vector<1x128xf32> to vector<1x1x128xf32>
    %cst_17 = arith.constant dense<0.000000e+00> : vector<1xf32>
    %55 = vector.multi_reduction <add>, %54, %cst_17 [1, 2] : vector<1x1x128xf32> to vector<1xf32>
    %56 = vector.shape_cast %55 : vector<1xf32> to vector<1x1x1xf32>
    %57 = vector.extract %56[0, 0, 0] : f32 from vector<1x1x1xf32>
    %58 = arith.addf %53, %57 : f32
    %c2_18 = arith.constant 2 : index
    %59 = memref.load %arg7[%c2_18] : memref<3xf32, #tpu.memory_space<smem>>
    memref.store %58, %arg7[%c2_18] : memref<3xf32, #tpu.memory_space<smem>>
    %c0_i32_19 = arith.constant 0 : i32
    %60 = arith.cmpi eq, %arg0, %c0_i32_19 : i32
    %61 = arith.extui %60 : i1 to i32
    %c0_i32_20 = arith.constant 0 : i32
    %62 = arith.cmpi ne, %61, %c0_i32_20 : i32
    scf.if %62 {
      %c0_21 = arith.constant 0 : index
      %63 = memref.load %arg7[%c0_21] : memref<3xf32, #tpu.memory_space<smem>>
      %c1_22 = arith.constant 1 : index
      %64 = memref.load %arg7[%c1_22] : memref<3xf32, #tpu.memory_space<smem>>
      %c2_23 = arith.constant 2 : index
      %65 = memref.load %arg7[%c2_23] : memref<3xf32, #tpu.memory_space<smem>>
      %66 = arith.divf %64, %65 : f32
      %67 = arith.addf %63, %66 : f32
      %c0_24 = arith.constant 0 : index
      %c0_25 = arith.constant 0 : index
      %68 = memref.load %arg6[%c0_24, %c0_25] : memref<1x1xf32, #tpu.memory_space<smem>>
      memref.store %67, %arg6[%c0_24, %c0_25] : memref<1x1xf32, #tpu.memory_space<smem>>
    } else {
    }
    return
  }
  func.func @transform_0(%arg0: i32) -> (i32, i32) {
    %c0_i32 = arith.constant 0 : i32
    %c0_i32_0 = arith.constant 0 : i32
    return %c0_i32, %arg0 : i32, i32
  }
  func.func @transform_1(%arg0: i32) -> (i32, i32) {
    %c0_i32 = arith.constant 0 : i32
    %c0_i32_0 = arith.constant 0 : i32
    return %c0_i32, %arg0 : i32, i32
  }
  func.func @transform_2(%arg0: i32) -> (i32, i32) {
    %c0_i32 = arith.constant 0 : i32
    %c0_i32_0 = arith.constant 0 : i32
    return %c0_i32, %arg0 : i32, i32
  }
  func.func @transform_3(%arg0: i32) -> (i32, i32) {
    %c0_i32 = arith.constant 0 : i32
    %c0_i32_0 = arith.constant 0 : i32
    return %c0_i32, %arg0 : i32, i32
  }
  func.func @transform_4(%arg0: i32) -> i32 {
    %c0_i32 = arith.constant 0 : i32
    %c0_i32_0 = arith.constant 0 : i32
    return %c0_i32 : i32
  }
  func.func @transform_5(%arg0: i32) -> (i32, i32) {
    %c0_i32 = arith.constant 0 : i32
    %c0_i32_0 = arith.constant 0 : i32
    %c0_i32_1 = arith.constant 0 : i32
    return %c0_i32, %c0_i32_0 : i32, i32
  }
}

</mosaic_0001>

<llo_original>
// kernel: criterion_forward.1
$region0: #{criterion_forward.1}
  #allocation0 [shape = 'u32[]', space=smem, size = 0x4, offset = 0x4, fixed_abs, tag = 'smem constant byte address 0x4 - core index']
  #allocation1 [shape = 'u32[144,128]{1,0:T(1,128)}', space=vmem, size = 0x12000, scoped, tag = 'internal scratch']
  #allocation2 [shape = 'f32[3]{0:T(128)}', space=smem, size = 0x200, scoped, tag = 'scratch operand']
  %s0 = inlined_call_operand.vmem [shape: f32[1,256], index: 0, kind: input, shape index: {}]
  %s1 = inlined_call_operand.vmem [shape: f32[1,256], index: 1, kind: input, shape index: {}]
  %s2 = inlined_call_operand.vmem [shape: f32[2,128], index: 2, kind: input, shape index: {}]
  %s3 = inlined_call_operand.vmem [shape: s32[1,128], index: 3, kind: input, shape index: {}]
  %s4 = inlined_call_operand.vmem [shape: f32[2], index: 4, kind: input, shape index: {}]
  %s5 = inlined_call_operand.hbm [shape: f32[1,1], index: 5, kind: output, shape index: {}]
  %s6 = sld [smem:[#allocation0]]
  $region42: #{criterion_forward.1} parent=0
    _
  %s8 = ssub.s32 1, %s6
  %s9 = scalar_select 0, %s8, %s6
  $region1: #{criterion_forward.1} parent=0
    #allocation3 [shape = 'u8[512]{0}', space=smem, size = 0x200, scoped, tag = 'input window, operand 4, single buffered']
    #allocation4 [shape = 's32[1]{0}', space=sflag, size = 0x4, scoped, tag = 'scoped memory for criterion_forward.1']
    #allocation5 [shape = 's32[1]{0}', space=sflag, size = 0x4, scoped, tag = 'scoped memory for criterion_forward.1']
    #allocation6 [shape = 'u8[512]{0}', space=smem, size = 0x200, scoped, tag = 'output window, operand 0, single buffered']
    %10 = vsyncpa [#allocation5], 0
    %11 = vsyncpa [#allocation4], 0
    // Predicated region
    $region2: #{criterion_forward.1} parent=1 // pred_check
      _
    $region3: #{criterion_forward.1} parent=1 // pred_check_branch
      %13 = sbr.rel (0) target = $region5
    $region4: #{criterion_forward.1} parent=1 // pred_region
      _
    $region5: #{criterion_forward.1} parent=1 // pred_fallthru
      _
    // Predicated region
    $region6: #{criterion_forward.1} parent=1 // pred_check
      _
    $region7: #{criterion_forward.1} parent=1 // pred_check_branch
      %15 = sbr.rel (0) target = $region9
    $region8: #{criterion_forward.1} parent=1 // pred_region
      _
    $region9: #{criterion_forward.1} parent=1 // pred_fallthru
      _
    // Predicated region
    $region10: #{criterion_forward.1} parent=1 // pred_check
      _
    $region11: #{criterion_forward.1} parent=1 // pred_check_branch
      %17 = sbr.rel (0) target = $region13
    $region12: #{criterion_forward.1} parent=1 // pred_region
      _
    $region13: #{criterion_forward.1} parent=1 // pred_fallthru
      _
    // Predicated region
    $region14: #{criterion_forward.1} parent=1 // pred_check
      _
    $region15: #{criterion_forward.1} parent=1 // pred_check_branch
      %19 = sbr.rel (0) target = $region17
    $region16: #{criterion_forward.1} parent=1 // pred_region
      _
    $region17: #{criterion_forward.1} parent=1 // pred_fallthru
      _
    // Predicated region
    $region18: #{criterion_forward.1} parent=1 // pred_check
      _
    $region19: #{criterion_forward.1} parent=1 // pred_check_branch
      %21 = sbr.rel (0) target = $region21
    $region20: #{criterion_forward.1} parent=1 // pred_region
      %s23 = ssub.s32 16, 16
      %24 = vsyncadd [#allocation5], %s23
      %s26 = sshll.u32 %s4, 4
      %s27 = int_to_ptr.vmem [resolvable:$true] %s26
      %29 = dma.vmem_to_smem %s27, 16, [#allocation3], [#allocation5]
    $region21: #{criterion_forward.1} parent=1 // pred_fallthru
      _
    // Predicated region
    $region22: #{criterion_forward.1} parent=1 // pred_check
      _
    $region23: #{criterion_forward.1} parent=1 // pred_check_branch
      %31 = sbr.rel (0) target = $region25
    $region24: #{criterion_forward.1} parent=1 // pred_region
      %32 = dma.done [#allocation5], 16
    $region25: #{criterion_forward.1} parent=1 // pred_fallthru
      _
    %33 = sfence
    %p34 = scmp.eq.s32.totalorder 0, 0
    // Predicated region
    $region26: #{criterion_forward.1} parent=1 // pred_check
      %p35 = pneg %p34
    $region27: #{criterion_forward.1} parent=1 // pred_check_branch
      %37 = sbr.rel (%p35) target = $region29
    $region28: #{criterion_forward.1} parent=1 // pred_region
      %s38 = scalar_lea.smem [#allocation2], 0
      %39 = sst [smem:[%s38]] 0.0
      %s40 = scalar_lea.smem [#allocation2], 1
      %41 = sst [smem:[%s40]] 0.0
      %s42 = scalar_lea.smem [#allocation2], 2
      %43 = sst [smem:[%s42]] 0.0
    $region29: #{criterion_forward.1} parent=1 // pred_fallthru
      _
    %v44 = vld [vmem:[%s0] sm:$0x3]
    %v45 = vld [vmem:[%s1] sm:$0x3]
    %v46 = vsub.f32 %v44, %v45
    %v47 = vmul.f32 %v46, %v46
    %v49 = vlaneseq
    %v50 = vshrl.u32 %v49, 7
    %v51 = vsub.s32 0, %v50
    %v52 = vrot.slane %v47, %v51
    %v53 = vlaneseq
    %v54 = vshrl.u32 %v53, 7
    %v55 = vsub.s32 1, %v54
    %v56 = vrot.slane %v47, %v55
    %vm59 = vcmask 1040384
    %v60 = vsel %vm59, %v52, 0.0
    %v61 = vsel %vm59, %v56, 0.0
    %v62 = vadd.f32 %v60, %v61
    %63 = vadd.xlane.f32.xlu0 %v62
    %v64 = vpop.xlane.xlu0 %63
    %v65 = vrot.slane %v64, 4
    %v66 = vadd.f32 %v64, %v65
    %v67 = vrot.slane %v66, 2
    %v68 = vadd.f32 %v66, %v67
    %v69 = vrot.slane %v68, 1
    %v70 = vadd.f32 %v68, %v69
    %s71 = vtos %v70
    %v72 = vld [vmem:[%s2] sm:$0x3]
    %v73 = vld [vmem:[%s3] sm:$0x1]
    %v75 = vrot.slane %v72, 1
    %v77 = vmax.f32 %v72, %v75
    %v78 = vsub.f32 %v72, %v77
    %v79 = vmul.f32 %v78, 1.442695
    %v80 = vpow.pop %v79
    %v82 = vrot.slane %v77, 7
    %v84 = vsub.f32 %v72, %v82
    %v85 = vmul.f32 %v84, 1.442695
    %v86 = vpow.pop %v85
    %v88 = vrot.slane %v86, 1
    %v90 = vadd.f32 %v80, %v88
    %v91 = vlog2.pop %v90
    %v92 = vmul.f32 %v91, 0.6931472
    %v93 = vadd.f32 %v92, %v77
    %vm94 = vcmp.eq.s32.totalorder %v73, 0
    %v95 = vsel %vm94, %v72, 0.0
    %s96 = sld [smem:[#allocation3]]
    %v97 = vstv %s96
    %v98 = vsel %vm94, %v97, 0.0
    %vm99 = vcmp.eq.s32.totalorder %v73, 1
    %v101 = vunpack.c.l.s4 1966171168
    %v102 = vunpack.c.0.s8 %v101
    %v103 = vlaneseq
    %v104 = vshrl.u32 %v103, 7
    %v105 = vsub.s32 %v102, %v104
    %v106 = vrot.slane %v72, %v105
    %v107 = vcombine.high %v106, %v106
    %v109 = vunpack.c.l.s4 1966171168
    %v110 = vunpack.c.0.s8 %v109
    %v111 = vlaneseq
    %v112 = vshrl.u32 %v111, 7
    %v113 = vsub.s32 %v110, %v112
    %v114 = vrot.slane %v107, %v113
    %v116 = vsel %vm99, %v114, %v95
    %s117 = sld [smem:[#allocation3 + $0x1]]
    %v118 = vstv %s117
    %v119 = vsel %vm99, %v118, %v98
    %v120 = vsub.f32 %v93, %v116
    %s121 = sld [smem:[#allocation2]]
    %s122 = sadd.f32 %s121, %s71
    %s123 = scalar_lea.smem [#allocation2], 0
    %124 = sst [smem:[%s123]] %s122
    %s125 = sld [smem:[#allocation2 + $0x1]]
    %v126 = vmul.f32 %v119, %v120
    %v127 = vsel %vm59, %v126, 0.0
    %128 = vadd.xlane.f32.xlu0 %v127
    %v129 = vpop.xlane.xlu0 %128
    %v130 = vrot.slane %v129, 4
    %v131 = vadd.f32 %v129, %v130
    %v132 = vrot.slane %v131, 2
    %v133 = vadd.f32 %v131, %v132
    %v134 = vrot.slane %v133, 1
    %v135 = vadd.f32 %v133, %v134
    %s136 = vtos %v135
    %s137 = sadd.f32 %s125, %s136
    %s138 = scalar_lea.smem [#allocation2], 1
    %139 = sst [smem:[%s138]] %s137
    %s140 = sld [smem:[#allocation2 + $0x2]]
    %v141 = vsel %vm59, %v119, 0.0
    %142 = vadd.xlane.f32.xlu0 %v141
    %v143 = vpop.xlane.xlu0 %142
    %v144 = vrot.slane %v143, 4
    %v145 = vadd.f32 %v143, %v144
    %v146 = vrot.slane %v145, 2
    %v147 = vadd.f32 %v145, %v146
    %v148 = vrot.slane %v147, 1
    %v149 = vadd.f32 %v147, %v148
    %s150 = vtos %v149
    %s151 = sadd.f32 %s140, %s150
    %s152 = scalar_lea.smem [#allocation2], 2
    %153 = sst [smem:[%s152]] %s151
    // Predicated region
    $region30: #{criterion_forward.1} parent=1 // pred_check
      %p154 = pneg %p34
    $region31: #{criterion_forward.1} parent=1 // pred_check_branch
      %156 = sbr.rel (%p154) target = $region33
    $region32: #{criterion_forward.1} parent=1 // pred_region
      %s157 = sld [smem:[#allocation2]]
      %s158 = sld [smem:[#allocation2 + $0x1]]
      %s159 = sld [smem:[#allocation2 + $0x2]]
      %v160 = vstv %s159
      %v161 = vrcp.pop %v160
      %s162 = vtos %v161
      %s163 = smul.f32 %s158, %s162
      %s164 = sadd.f32 %s157, %s163
      %s165 = scalar_lea.smem [#allocation6], 0
      %166 = sst [smem:[%s165]] %s164
    $region33: #{criterion_forward.1} parent=1 // pred_fallthru
      _
    // Predicated region
    $region34: #{criterion_forward.1} parent=1 // pred_check
      _
    $region35: #{criterion_forward.1} parent=1 // pred_check_branch
      %168 = sbr.rel (0) target = $region37
    $region36: #{criterion_forward.1} parent=1 // pred_region
      %s170 = ssub.s32 16, 16
      %171 = vsyncadd [#allocation4], %s170
      %174 = dma.smem_to_hbm [#allocation6], 16, %s5, [#allocation4]
    $region37: #{criterion_forward.1} parent=1 // pred_fallthru
      _
    // Predicated region
    $region38: #{criterion_forward.1} parent=1 // pred_check
      _
    $region39: #{criterion_forward.1} parent=1 // pred_check_branch
      %176 = sbr.rel (0) target = $region41
    $region40: #{criterion_forward.1} parent=1 // pred_region
      %177 = dma.done [#allocation4], 16
    $region41: #{criterion_forward.1} parent=1 // pred_fallthru
      _
    %178 = sfence
    %179 = vsyncpa [#allocation4], 1
    %180 = vsyncpa [#allocation5], 1

</llo_original>
